<compile_context>
chip_gen: v7x
topology: tpu7x:2x2x1
jax: 0.10.0
libtpu: 0.0.40
codegen_flags: <defaults>
</compile_context>

<pallas_src>
import jax
import jax.numpy as jnp
from jax.experimental import pallas as pl
from jax.experimental.pallas import tpu as pltpu


def _round_up(n: int, m: int) -> int:
    return ((n + m - 1) // m) * m


def _pick_batch_tile(B: int, max_tile: int = 1024) -> int:
    """Pick a batch tile: whole batch when small, else a multiple of 128 with
    at least 2 grid steps (megacore sharding on v7x), capped at max_tile."""
    if B <= 256:
        return B  # block dims equal to full array dims are always layout-legal
    tile = _round_up(-(-B // 2), 128)  # >= 2 grid steps
    return min(max_tile, tile)


def _mlp_kernel(x_ref, w1_ref, b1_ref, w2_ref, b2_ref, w3_ref, b3_ref, o_ref):
    x = x_ref[...]                                   # (bt, D), compute dtype

    # Layer 1: MXU matmul with f32 accumulation; bias + ReLU on the VPU.
    h1 = jnp.dot(x, w1_ref[...], preferred_element_type=jnp.float32) + b1_ref[...]
    h1 = jnp.maximum(h1, 0.0)
    # TODO(synk): nn.Dropout(p=0.0) is an identity (eval / p==0); not emitted.

    # Layer 2: cast activations to the weight compute dtype (no-op for f32).
    h2 = jnp.dot(h1.astype(w2_ref.dtype), w2_ref[...],
                 preferred_element_type=jnp.float32) + b2_ref[...]
    h2 = jnp.maximum(h2, 0.0)                        # (bt, H2p), f32

    # Layer 3 (H2p -> 1): skip an N=1 MXU pass.  Transpose h2 once in the
    # compute dtype (XLU traffic halves in bf16 mode), multiply by the f32 w3
    # column (VPU, lane broadcast), reduce over sublanes (XLU).  Result is
    # lane-dense: the batch dimension lives in lanes -> unmasked stores.
    h2_t = h2.astype(x.dtype).T                      # (H2p, bt)
    out = jnp.sum(h2_t.astype(jnp.float32) * w3_ref[...],
                  axis=0, keepdims=True) + b3_ref[...]
    o_ref[...] = out.astype(o_ref.dtype)             # (1, bt) f32 row


def prepare_params(w1, b1, w2, b2, w3, b3, *, compute_dtype=jnp.float32):
    """One-time prep: pad hidden (lane) dims to multiples of 128 and cast the
    matmul weights to the compute dtype.  Zero padding is exact: padded h1/h2
    columns are ReLU(0)=0 and the corresponding w2/w3 rows are 0."""
    D, H1 = w1.shape
    H2 = w2.shape[1]
    H1p = _round_up(H1, 128)
    H2p = _round_up(H2, 128)

    w1p = jnp.pad(w1, ((0, 0), (0, H1p - H1))).astype(compute_dtype)
    b1p = jnp.pad(jnp.reshape(b1, (1, H1)), ((0, 0), (0, H1p - H1))).astype(jnp.float32)
    w2p = jnp.pad(w2, ((0, H1p - H1), (0, H2p - H2))).astype(compute_dtype)
    b2p = jnp.pad(jnp.reshape(b2, (1, H2)), ((0, 0), (0, H2p - H2))).astype(jnp.float32)
    w3p = jnp.pad(jnp.reshape(w3, (H2, 1)), ((0, H2p - H2), (0, 0))).astype(jnp.float32)
    b3p = jnp.reshape(b3, (1, 1)).astype(jnp.float32)
    return (w1p, b1p, w2p, b2p, w3p, b3p)


def forward_network_two_hidden_layers(x, params, *, batch_tile=None, dropout_rate=0.0):
    """Fused 2-hidden-layer MLP forward. x: (B, D) -> (B, 1) float32.

    `params` must come from prepare_params().  Works for f32 or bf16 compute
    dtype (accumulation is always f32)."""
    assert dropout_rate == 0.0, "only Dropout(p=0.0) / eval mode is supported"
    w1p, b1p, w2p, b2p, w3p, b3p = params
    B, D = x.shape
    assert w1p.shape[0] == D
    H1p = w1p.shape[1]
    H2p = w2p.shape[1]

    x = x.astype(w1p.dtype)  # no-op in f32 mode

    if batch_tile is None:
        batch_tile = _pick_batch_tile(B)
    num_tiles = pl.cdiv(B, batch_tile)  # partial last block; no x padding

    out_row = pl.pallas_call(
        _mlp_kernel,
        out_shape=jax.ShapeDtypeStruct((1, B), jnp.float32),
        grid=(num_tiles,),
        in_specs=[
            pl.BlockSpec((batch_tile, D), lambda i: (i, 0)),   # x tile
            pl.BlockSpec((D, H1p), lambda i: (0, 0)),          # W1 (resident)
            pl.BlockSpec((1, H1p), lambda i: (0, 0)),          # b1
            pl.BlockSpec((H1p, H2p), lambda i: (0, 0)),        # W2 (resident)
            pl.BlockSpec((1, H2p), lambda i: (0, 0)),          # b2
            pl.BlockSpec((H2p, 1), lambda i: (0, 0)),          # w3 column (f32)
            pl.BlockSpec((1, 1), lambda i: (0, 0)),            # b3 (f32)
        ],
        # Lane-dense output: one (1, batch_tile) row per grid step.
        out_specs=pl.BlockSpec((1, batch_tile), lambda i: (0, i)),
        compiler_params=pltpu.CompilerParams(
            # Batch grid axis shards across TensorCores (2 TCs on v7x).
            dimension_semantics=("parallel",),
            # 32 MiB: matches v6e/v7x defaults, lifts v5e's 16 MiB default so
            # large batch_tile sweeps don't spuriously VMEM-OOM there.
            vmem_limit_bytes=32 * 1024 * 1024,
        ),
    )(x, w1p, b1p, w2p, b2p, w3p, b3p)

    # Layout plumbing only: (1, B) lane-dense slab -> (B, 1) column.
    return out_row.reshape(B, 1)


def _reference(x, w1, b1, w2, b2, w3, b3):
    h1 = jnp.maximum(x @ w1 + jnp.reshape(b1, (1, -1)), 0.0)
    h2 = jnp.maximum(h1 @ w2 + jnp.reshape(b2, (1, -1)), 0.0)
    return h2 @ w3 + jnp.reshape(b3, (1, 1))


if __name__ == "__main__":
    # Shapes consistent with the module: input_dim=32, hidden1=64, hidden2=32.
    # B=300 exercises a multi-step grid (tile 256 + partial tile of 44 rows).
    B, D, H1, H2 = 300, 32, 64, 32
    key = jax.random.PRNGKey(0)
    kx, k1, kb1, k2, kb2, k3, kb3 = jax.random.split(key, 7)

    x = jax.random.normal(kx, (B, D), dtype=jnp.float32)
    w1 = jax.random.normal(k1, (D, H1), dtype=jnp.float32) * 0.1
    b1 = jax.random.normal(kb1, (1, H1), dtype=jnp.float32) * 0.1
    w2 = jax.random.normal(k2, (H1, H2), dtype=jnp.float32) * 0.1
    b2 = jax.random.normal(kb2, (1, H2), dtype=jnp.float32) * 0.1
    w3 = jax.random.normal(k3, (H2, 1), dtype=jnp.float32) * 0.1
    b3 = jax.random.normal(kb3, (1, 1), dtype=jnp.float32) * 0.1

    # One-time weight prep (static across calls).  Use compute_dtype=jnp.bfloat16
    # on v6e/v7x for half the x bandwidth + full MXU bf16 rate (looser tol).
    params = prepare_params(w1, b1, w2, b2, w3, b3, compute_dtype=jnp.float32)

    out = forward_network_two_hidden_layers(x, params)
    out = jax.block_until_ready(out)

    ref = _reference(x, w1, b1, w2, b2, w3, b3)
    assert out.shape == (B, 1), out.shape
    max_err = float(jnp.max(jnp.abs(out - ref)))
    assert jnp.allclose(out, ref, atol=1e-5, rtol=1e-5), f"mismatch vs reference: {max_err}"

    print("KERNEL_OK")
</pallas_src>

<mosaic_0001>
module attributes {stable_mosaic.version = 11 : i64} {
  func.func @_mlp_kernel(%arg0: i32, %arg1: memref<256x32xf32, #tpu.memory_space<vmem>>, %arg2: memref<32x128xf32, #tpu.memory_space<vmem>>, %arg3: memref<1x128xf32, #tpu.memory_space<vmem>>, %arg4: memref<128x128xf32, #tpu.memory_space<vmem>>, %arg5: memref<1x128xf32, #tpu.memory_space<vmem>>, %arg6: memref<128x1xf32, #tpu.memory_space<vmem>>, %arg7: memref<1x1xf32, #tpu.memory_space<vmem>>, %arg8: memref<1x256xf32, #tpu.memory_space<vmem>>) attributes {dimension_semantics = [#tpu.dimension_semantics<parallel>], iteration_bounds = array<i64: 2>, scalar_prefetch = 0 : i64, scratch_operands = 0 : i64, tpu.core_type = #tpu.core_type<tc>, window_params = [{transform_indices = @transform_0, window_bounds = array<i64: 256, 32>}, {pipeline_mode = #tpu.pipeline_mode<synchronous>, transform_indices = @transform_1, window_bounds = array<i64: 32, 128>}, {pipeline_mode = #tpu.pipeline_mode<synchronous>, transform_indices = @transform_2, window_bounds = array<i64: 1, 128>}, {pipeline_mode = #tpu.pipeline_mode<synchronous>, transform_indices = @transform_3, window_bounds = array<i64: 128, 128>}, {pipeline_mode = #tpu.pipeline_mode<synchronous>, transform_indices = @transform_4, window_bounds = array<i64: 1, 128>}, {pipeline_mode = #tpu.pipeline_mode<synchronous>, transform_indices = @transform_5, window_bounds = array<i64: 128, 1>}, {pipeline_mode = #tpu.pipeline_mode<synchronous>, transform_indices = @transform_6, window_bounds = array<i64: 1, 1>}, {transform_indices = @transform_7, window_bounds = array<i64: 1, 256>}]} {
    %c0 = arith.constant 0 : index
    %c0_0 = arith.constant 0 : index
    %0 = vector.load %arg1[%c0, %c0_0] : memref<256x32xf32, #tpu.memory_space<vmem>>, vector<256x32xf32>
    %c0_1 = arith.constant 0 : index
    %c0_2 = arith.constant 0 : index
    %1 = vector.load %arg2[%c0_1, %c0_2] : memref<32x128xf32, #tpu.memory_space<vmem>>, vector<32x128xf32>
    %cst = arith.constant dense<0.000000e+00> : vector<256x128xf32>
    %2 = tpu.matmul %0, %1, %cst {dimension_numbers = #tpu.dot_dimension_numbers<[1], [0], [0], [1], [0, 0, 1, 1], [], []>} : vector<256x32xf32>, vector<32x128xf32>, vector<256x128xf32> -> vector<256x128xf32>
    %c0_3 = arith.constant 0 : index
    %c0_4 = arith.constant 0 : index
    %3 = vector.load %arg3[%c0_3, %c0_4] : memref<1x128xf32, #tpu.memory_space<vmem>>, vector<1x128xf32>
    %4 = vector.broadcast %3 : vector<1x128xf32> to vector<256x128xf32>
    %5 = arith.addf %2, %4 : vector<256x128xf32>
    %cst_5 = arith.constant 0.000000e+00 : f32
    %6 = vector.broadcast %cst_5 : f32 to vector<256x128xf32>
    %7 = arith.maximumf %5, %6 : vector<256x128xf32>
    %c0_6 = arith.constant 0 : index
    %c0_7 = arith.constant 0 : index
    %8 = vector.load %arg4[%c0_6, %c0_7] : memref<128x128xf32, #tpu.memory_space<vmem>>, vector<128x128xf32>
    %cst_8 = arith.constant dense<0.000000e+00> : vector<256x128xf32>
    %9 = tpu.matmul %7, %8, %cst_8 {dimension_numbers = #tpu.dot_dimension_numbers<[1], [0], [0], [1], [0, 0, 1, 1], [], []>} : vector<256x128xf32>, vector<128x128xf32>, vector<256x128xf32> -> vector<256x128xf32>
    %c0_9 = arith.constant 0 : index
    %c0_10 = arith.constant 0 : index
    %10 = vector.load %arg5[%c0_9, %c0_10] : memref<1x128xf32, #tpu.memory_space<vmem>>, vector<1x128xf32>
    %11 = vector.broadcast %10 : vector<1x128xf32> to vector<256x128xf32>
    %12 = arith.addf %9, %11 : vector<256x128xf32>
    %cst_11 = arith.constant 0.000000e+00 : f32
    %13 = vector.broadcast %cst_11 : f32 to vector<256x128xf32>
    %14 = arith.maximumf %12, %13 : vector<256x128xf32>
    %15 = tpu.transpose %14, [1, 0] : vector<256x128xf32> -> vector<128x256xf32>
    %c0_12 = arith.constant 0 : index
    %c0_13 = arith.constant 0 : index
    %16 = vector.load %arg6[%c0_12, %c0_13] : memref<128x1xf32, #tpu.memory_space<vmem>>, vector<128x1xf32>
    %17 = vector.broadcast %16 : vector<128x1xf32> to vector<128x256xf32>
    %18 = arith.mulf %15, %17 : vector<128x256xf32>
    %cst_14 = arith.constant dense<0.000000e+00> : vector<256xf32>
    %19 = vector.multi_reduction <add>, %18, %cst_14 [0] : vector<128x256xf32> to vector<256xf32>
    %20 = vector.shape_cast %19 : vector<256xf32> to vector<1x256xf32>
    %c0_15 = arith.constant 0 : index
    %c0_16 = arith.constant 0 : index
    %21 = vector.load %arg7[%c0_15, %c0_16] : memref<1x1xf32, #tpu.memory_space<vmem>>, vector<1x1xf32>
    %22 = vector.broadcast %21 : vector<1x1xf32> to vector<1x256xf32>
    %23 = arith.addf %20, %22 : vector<1x256xf32>
    %c0_17 = arith.constant 0 : index
    %c0_18 = arith.constant 0 : index
    %24 = vector.load %arg8[%c0_17, %c0_18] : memref<1x256xf32, #tpu.memory_space<vmem>>, vector<1x256xf32>
    tpu.vector_store %arg8[%c0_17, %c0_18], %23 {strides = array<i32>} : memref<1x256xf32, #tpu.memory_space<vmem>>, vector<1x256xf32>,
    return
  }
  func.func @transform_0(%arg0: i32) -> (i32, i32) {
    %c0_i32 = arith.constant 0 : i32
    %c0_i32_0 = arith.constant 0 : i32
    return %arg0, %c0_i32 : i32, i32
  }
  func.func @transform_1(%arg0: i32) -> (i32, i32) {
    %c0_i32 = arith.constant 0 : i32
    %c0_i32_0 = arith.constant 0 : i32
    %c0_i32_1 = arith.constant 0 : i32
    return %c0_i32, %c0_i32_0 : i32, i32
  }
  func.func @transform_2(%arg0: i32) -> (i32, i32) {
    %c0_i32 = arith.constant 0 : i32
    %c0_i32_0 = arith.constant 0 : i32
    %c0_i32_1 = arith.constant 0 : i32
    return %c0_i32, %c0_i32_0 : i32, i32
  }
  func.func @transform_3(%arg0: i32) -> (i32, i32) {
    %c0_i32 = arith.constant 0 : i32
    %c0_i32_0 = arith.constant 0 : i32
    %c0_i32_1 = arith.constant 0 : i32
    return %c0_i32, %c0_i32_0 : i32, i32
  }
  func.func @transform_4(%arg0: i32) -> (i32, i32) {
    %c0_i32 = arith.constant 0 : i32
    %c0_i32_0 = arith.constant 0 : i32
    %c0_i32_1 = arith.constant 0 : i32
    return %c0_i32, %c0_i32_0 : i32, i32
  }
  func.func @transform_5(%arg0: i32) -> (i32, i32) {
    %c0_i32 = arith.constant 0 : i32
    %c0_i32_0 = arith.constant 0 : i32
    %c0_i32_1 = arith.constant 0 : i32
    return %c0_i32, %c0_i32_0 : i32, i32
  }
  func.func @transform_6(%arg0: i32) -> (i32, i32) {
    %c0_i32 = arith.constant 0 : i32
    %c0_i32_0 = arith.constant 0 : i32
    %c0_i32_1 = arith.constant 0 : i32
    return %c0_i32, %c0_i32_0 : i32, i32
  }
  func.func @transform_7(%arg0: i32) -> (i32, i32) {
    %c0_i32 = arith.constant 0 : i32
    %c0_i32_0 = arith.constant 0 : i32
    return %c0_i32, %arg0 : i32, i32
  }
}

</mosaic_0001>

<llo_original>
// kernel: tpu_custom_call.1
$region0: #{tpu_custom_call.1}
  #allocation0 [shape = 'u32[]', space=smem, size = 0x4, offset = 0x4, fixed_abs, tag = 'smem constant byte address 0x4 - core index']
  #allocation1 [shape = 'u32[144,128]{1,0:T(1,128)}', space=vmem, size = 0x12000, scoped, tag = 'internal scratch']
  #allocation2 [shape = 'f32[1,1]{1,0:T(1,128)S(1)}', space=vmem, size = 0x200, scoped, tag = 'scoped memory for tpu_custom_call.1']
  %s0 = inlined_call_operand.vmem [shape: f32[300,32], index: 0, kind: input, shape index: {}]
  %s1 = inlined_call_operand.vmem [shape: f32[32,128], index: 1, kind: input, shape index: {}]
  %s2 = inlined_call_operand.vmem [shape: f32[1,128], index: 2, kind: input, shape index: {}]
  %s3 = inlined_call_operand.vmem [shape: f32[128,128], index: 3, kind: input, shape index: {}]
  %s4 = inlined_call_operand.vmem [shape: f32[1,128], index: 4, kind: input, shape index: {}]
  %s5 = inlined_call_operand.vmem [shape: f32[128,1], index: 5, kind: input, shape index: {}]
  %s6 = inlined_call_operand.<no memory space> [shape: f32[1,1], index: 6, kind: input, shape index: {}]
  %s7 = inlined_call_operand.hbm [shape: f32[1,300], index: 7, kind: output, shape index: {}]
  %s8 = sld [smem:[#allocation0]]
  $region61: #{tpu_custom_call.1} parent=0
    _
  %s10 = ssub.s32 1, %s8
  %s11 = scalar_select 0, %s10, %s8
  %v12 = vstv %s6
  %13 = vst [vmem:[#allocation2] sm:$0x1] %v12
  $region1: #{tpu_custom_call.1} parent=0
    #allocation3 [shape = 'u8[2048]{0}', space=vmem, size = 0x800, scoped, tag = 'output window, operand 0']
    #allocation4 [shape = 's32[2]{0}', space=sflag, size = 0x8, scoped, tag = 'scoped memory for tpu_custom_call.1']
    %14 = vsyncpa [#allocation4], 0
    %s15 = scalar_lea.sflag [#allocation4], 1
    %16 = vsyncpa %s15, 0
    loop: start=0, step=1, limit=4
    $region2: #{tpu_custom_call.1} parent=1 // loop_pre_header
      _
    $region3: #{tpu_custom_call.1} parent=1 // loop_header
      %s18 = sphi 0, %s22
      %p19 = scmp.ge.s32.totalorder %s18, 4
      %s28 = sphi 0, %s30
      %s31 = sphi 0, %s28
      %s32 = sphi 0, %s31
      %s48 = sphi 0, %s32
      %s52 = sphi 0, %s52
      %s54 = sphi 0, %s52
      %s55 = sphi 0, %s54
      %s69 = sphi 0, %s55
      %s73 = sphi 0, %s73
      %s75 = sphi 0, %s73
      %s76 = sphi 0, %s75
      %s90 = sphi 0, %s76
      %s94 = sphi 0, %s94
      %s96 = sphi 0, %s94
      %s97 = sphi 0, %s96
      %s111 = sphi 0, %s97
      %s115 = sphi 0, %s115
      %s117 = sphi 0, %s115
      %s118 = sphi 0, %s117
      %s132 = sphi 0, %s118
      %s136 = sphi 0, %s136
      %s138 = sphi 0, %s136
      %s139 = sphi 0, %s138
      %s153 = sphi 0, %s139
      %s157 = sphi 0, %s157
      %s159 = sphi 0, %s157
      %s160 = sphi 0, %s159
      %s174 = sphi 0, %s160
      %s180 = sphi 0, %s182
      %s183 = sphi 0, %s180
      %s184 = sphi 0, %s183
      %s200 = sphi 0, %s184
    $region4: #{tpu_custom_call.1} parent=1 // loop_header_branch
      %21 = sbr.rel (%p19) target = $region8
    $region5: #{tpu_custom_call.1} parent=1 // loop_body
      %s23 = ssub.s32 %s18, 1
      %s24 = ssub.s32 %s18, 2
      %s25 = sadd.s32 %s18, 1
      %s26 = ssub.s32 %s18, %s25
      %p27 = scmp.eq.s32.totalorder %s26, 0
      %s29 = sadd.s32 %s28, 1
      %s30 = scalar_select %p27, %s28, %s29
      %p33 = pneg %p27
      %p34 = scmp.eq.s32.totalorder %s18, 1
      %p35 = por %p33, %p34
      %p36 = scmp.ne.s32.totalorder %s28, %s31
      %p37 = scmp.eq.s32.totalorder %s18, 0
      %p38 = por %p36, %p37
      %p39 = scmp.ne.s32.totalorder %s28, %s31
      %p40 = scmp.eq.s32.totalorder %s23, 1
      %p41 = por %p39, %p40
      %p42 = scmp.ne.s32.totalorder %s31, %s32
      %p43 = scmp.eq.s32.totalorder %s23, 0
      %p44 = por %p42, %p43
      %p45 = scmp.ne.s32.totalorder %s31, %s32
      %p46 = scmp.eq.s32.totalorder %s24, 1
      %p47 = por %p45, %p46
      %p49 = scmp.ne.s32.totalorder %s32, %s48
      %p50 = scmp.eq.s32.totalorder %s24, 0
      %p51 = por %p49, %p50
      %s53 = sadd.s32 %s52, 1
      %p56 = scmp.eq.s32.totalorder %s18, 1
      %p57 = scmp.ne.s32.totalorder %s52, %s54
      %p58 = scmp.eq.s32.totalorder %s18, 0
      %p59 = por %p57, %p58
      %p60 = scmp.ne.s32.totalorder %s52, %s54
      %p61 = scmp.eq.s32.totalorder %s23, 1
      %p62 = por %p60, %p61
      %p63 = scmp.ne.s32.totalorder %s54, %s55
      %p64 = scmp.eq.s32.totalorder %s23, 0
      %p65 = por %p63, %p64
      %p66 = scmp.ne.s32.totalorder %s54, %s55
      %p67 = scmp.eq.s32.totalorder %s24, 1
      %p68 = por %p66, %p67
      %p70 = scmp.ne.s32.totalorder %s55, %s69
      %p71 = scmp.eq.s32.totalorder %s24, 0
      %p72 = por %p70, %p71
      %s74 = sadd.s32 %s73, 1
      %p77 = scmp.eq.s32.totalorder %s18, 1
      %p78 = scmp.ne.s32.totalorder %s73, %s75
      %p79 = scmp.eq.s32.totalorder %s18, 0
      %p80 = por %p78, %p79
      %p81 = scmp.ne.s32.totalorder %s73, %s75
      %p82 = scmp.eq.s32.totalorder %s23, 1
      %p83 = por %p81, %p82
      %p84 = scmp.ne.s32.totalorder %s75, %s76
      %p85 = scmp.eq.s32.totalorder %s23, 0
      %p86 = por %p84, %p85
      %p87 = scmp.ne.s32.totalorder %s75, %s76
      %p88 = scmp.eq.s32.totalorder %s24, 1
      %p89 = por %p87, %p88
      %p91 = scmp.ne.s32.totalorder %s76, %s90
      %p92 = scmp.eq.s32.totalorder %s24, 0
      %p93 = por %p91, %p92
      %s95 = sadd.s32 %s94, 1
      %p98 = scmp.eq.s32.totalorder %s18, 1
      %p99 = scmp.ne.s32.totalorder %s94, %s96
      %p100 = scmp.eq.s32.totalorder %s18, 0
      %p101 = por %p99, %p100
      %p102 = scmp.ne.s32.totalorder %s94, %s96
      %p103 = scmp.eq.s32.totalorder %s23, 1
      %p104 = por %p102, %p103
      %p105 = scmp.ne.s32.totalorder %s96, %s97
      %p106 = scmp.eq.s32.totalorder %s23, 0
      %p107 = por %p105, %p106
      %p108 = scmp.ne.s32.totalorder %s96, %s97
      %p109 = scmp.eq.s32.totalorder %s24, 1
      %p110 = por %p108, %p109
      %p112 = scmp.ne.s32.totalorder %s97, %s111
      %p113 = scmp.eq.s32.totalorder %s24, 0
      %p114 = por %p112, %p113
      %s116 = sadd.s32 %s115, 1
      %p119 = scmp.eq.s32.totalorder %s18, 1
      %p120 = scmp.ne.s32.totalorder %s115, %s117
      %p121 = scmp.eq.s32.totalorder %s18, 0
      %p122 = por %p120, %p121
      %p123 = scmp.ne.s32.totalorder %s115, %s117
      %p124 = scmp.eq.s32.totalorder %s23, 1
      %p125 = por %p123, %p124
      %p126 = scmp.ne.s32.totalorder %s117, %s118
      %p127 = scmp.eq.s32.totalorder %s23, 0
      %p128 = por %p126, %p127
      %p129 = scmp.ne.s32.totalorder %s117, %s118
      %p130 = scmp.eq.s32.totalorder %s24, 1
      %p131 = por %p129, %p130
      %p133 = scmp.ne.s32.totalorder %s118, %s132
      %p134 = scmp.eq.s32.totalorder %s24, 0
      %p135 = por %p133, %p134
      %s137 = sadd.s32 %s136, 1
      %p140 = scmp.eq.s32.totalorder %s18, 1
      %p141 = scmp.ne.s32.totalorder %s136, %s138
      %p142 = scmp.eq.s32.totalorder %s18, 0
      %p143 = por %p141, %p142
      %p144 = scmp.ne.s32.totalorder %s136, %s138
      %p145 = scmp.eq.s32.totalorder %s23, 1
      %p146 = por %p144, %p145
      %p147 = scmp.ne.s32.totalorder %s138, %s139
      %p148 = scmp.eq.s32.totalorder %s23, 0
      %p149 = por %p147, %p148
      %p150 = scmp.ne.s32.totalorder %s138, %s139
      %p151 = scmp.eq.s32.totalorder %s24, 1
      %p152 = por %p150, %p151
      %p154 = scmp.ne.s32.totalorder %s139, %s153
      %p155 = scmp.eq.s32.totalorder %s24, 0
      %p156 = por %p154, %p155
      %s158 = sadd.s32 %s157, 1
      %p161 = scmp.eq.s32.totalorder %s18, 1
      %p162 = scmp.ne.s32.totalorder %s157, %s159
      %p163 = scmp.eq.s32.totalorder %s18, 0
      %p164 = por %p162, %p163
      %p165 = scmp.ne.s32.totalorder %s157, %s159
      %p166 = scmp.eq.s32.totalorder %s23, 1
      %p167 = por %p165, %p166
      %p168 = scmp.ne.s32.totalorder %s159, %s160
      %p169 = scmp.eq.s32.totalorder %s23, 0
      %p170 = por %p168, %p169
      %p171 = scmp.ne.s32.totalorder %s159, %s160
      %p172 = scmp.eq.s32.totalorder %s24, 1
      %p173 = por %p171, %p172
      %p175 = scmp.ne.s32.totalorder %s160, %s174
      %p176 = scmp.eq.s32.totalorder %s24, 0
      %p177 = por %p175, %p176
      %s178 = ssub.s32 %s18, %s25
      %p179 = scmp.eq.s32.totalorder %s178, 0
      %s181 = sadd.s32 %s180, 1
      %s182 = scalar_select %p179, %s180, %s181
      %p185 = pneg %p179
      %p186 = scmp.eq.s32.totalorder %s18, 1
      %p187 = por %p185, %p186
      %p188 = scmp.ne.s32.totalorder %s180, %s183
      %p189 = scmp.eq.s32.totalorder %s18, 0
      %p190 = por %p188, %p189
      %p191 = scmp.ne.s32.totalorder %s180, %s183
      %p192 = scmp.eq.s32.totalorder %s23, 1
      %p193 = por %p191, %p192
      %p194 = scmp.ne.s32.totalorder %s183, %s184
      %p195 = scmp.eq.s32.totalorder %s23, 0
      %p196 = por %p194, %p195
      %p197 = scmp.ne.s32.totalorder %s183, %s184
      %p198 = scmp.eq.s32.totalorder %s24, 1
      %p199 = por %p197, %p198
      %p201 = scmp.ne.s32.totalorder %s184, %s200
      %p202 = scmp.eq.s32.totalorder %s24, 0
      %p203 = por %p201, %p202
      %p204 = scmp.le.s32.totalorder 1, %s18
      %p205 = scmp.lt.s32.totalorder %s18, 3
      %p206 = pnand %p204, %p205
      %p207 = pneg %p206
      // Predicated region
      $region9: #{tpu_custom_call.1} parent=5 // pred_check
        _
      $region10: #{tpu_custom_call.1} parent=5 // pred_check_branch
        %209 = sbr.rel (%p206) target = $region12
      $region11: #{tpu_custom_call.1} parent=5 // pred_region
        %s210 = ssub.s32 %s18, 1
        // Predicated region
        $region13: #{tpu_custom_call.1} parent=11 // pred_check
          %p211 = pneg %p65
        $region14: #{tpu_custom_call.1} parent=11 // pred_check_branch
          %213 = sbr.rel (%p211) target = $region16
        $region15: #{tpu_custom_call.1} parent=11 // pred_region
          _
        $region16: #{tpu_custom_call.1} parent=11 // pred_fallthru
          _
        // Predicated region
        $region17: #{tpu_custom_call.1} parent=11 // pred_check
          %p214 = pneg %p86
        $region18: #{tpu_custom_call.1} parent=11 // pred_check_branch
          %216 = sbr.rel (%p214) target = $region20
        $region19: #{tpu_custom_call.1} parent=11 // pred_region
          _
        $region20: #{tpu_custom_call.1} parent=11 // pred_fallthru
          _
        // Predicated region
        $region21: #{tpu_custom_call.1} parent=11 // pred_check
          %p217 = pneg %p107
        $region22: #{tpu_custom_call.1} parent=11 // pred_check_branch
          %219 = sbr.rel (%p217) target = $region24
        $region23: #{tpu_custom_call.1} parent=11 // pred_region
          _
        $region24: #{tpu_custom_call.1} parent=11 // pred_fallthru
          _
        // Predicated region
        $region25: #{tpu_custom_call.1} parent=11 // pred_check
          %p220 = pneg %p128
        $region26: #{tpu_custom_call.1} parent=11 // pred_check_branch
          %222 = sbr.rel (%p220) target = $region28
        $region27: #{tpu_custom_call.1} parent=11 // pred_region
          _
        $region28: #{tpu_custom_call.1} parent=11 // pred_fallthru
          _
        // Predicated region
        $region29: #{tpu_custom_call.1} parent=11 // pred_check
          %p223 = pneg %p149
        $region30: #{tpu_custom_call.1} parent=11 // pred_check_branch
          %225 = sbr.rel (%p223) target = $region32
        $region31: #{tpu_custom_call.1} parent=11 // pred_region
          _
        $region32: #{tpu_custom_call.1} parent=11 // pred_fallthru
          _
        // Predicated region
        $region33: #{tpu_custom_call.1} parent=11 // pred_check
          %p226 = pneg %p170
        $region34: #{tpu_custom_call.1} parent=11 // pred_check_branch
          %228 = sbr.rel (%p226) target = $region36
        $region35: #{tpu_custom_call.1} parent=11 // pred_region
          _
        $region36: #{tpu_custom_call.1} parent=11 // pred_fallthru
          _
      $region12: #{tpu_custom_call.1} parent=5 // pred_fallthru
        _
      %p229 = scmp.lt.s32.totalorder %s18, 2
      // Predicated region
      $region37: #{tpu_custom_call.1} parent=5 // pred_check
        %p230 = pneg %p229
      $region38: #{tpu_custom_call.1} parent=5 // pred_check_branch
        %232 = sbr.rel (%p230) target = $region40
      $region39: #{tpu_custom_call.1} parent=5 // pred_region
        // Predicated region
        $region41: #{tpu_custom_call.1} parent=39 // pred_check
          %p233 = pneg %p38
        $region42: #{tpu_custom_call.1} parent=39 // pred_check_branch
          %235 = sbr.rel (%p233) target = $region44
        $region43: #{tpu_custom_call.1} parent=39 // pred_region
          %s236 = smul.u32 32, %s18
          %s237 = ssub.s32 38, %s236
          %p238 = scmp.lt.s32.totalorder %s237, 32
          %s239 = scalar_select %p238, %s237, 32
          %s240 = smul.u32 128, %s239
          %p241 = scmp.lt.s32.totalorder %s236, 37
          %s242 = scalar_select %p241, %s236, 37
          %s243 = smul.addr %s242, 8
          %s244 = scalar_lea.vmem %s0, %s243
          %s245 = smul.u32 32, %s18
          %s246 = ssub.s32 38, %s245
          %p247 = scmp.lt.s32.totalorder %s246, 32
          %s248 = scalar_select %p247, %s246, 32
          %s249 = smul.u32 128, %s248
        $region44: #{tpu_custom_call.1} parent=39 // pred_fallthru
          _
      $region40: #{tpu_custom_call.1} parent=5 // pred_fallthru
        _
      %p250 = scmp.le.s32.totalorder 1, %s18
      %p251 = scmp.lt.s32.totalorder %s18, 3
      %p252 = pnand %p250, %p251
      %p253 = pneg %p252
      // Predicated region
      $region45: #{tpu_custom_call.1} parent=5 // pred_check
        _
      $region46: #{tpu_custom_call.1} parent=5 // pred_check_branch
        %255 = sbr.rel (%p252) target = $region48
      $region47: #{tpu_custom_call.1} parent=5 // pred_region
        %s256 = ssub.s32 %s18, 1
        %s257 = smul.u32 32, %s23
        %s258 = ssub.s32 38, %s257
        %p259 = scmp.lt.s32.totalorder %s258, 32
        %s260 = scalar_select %p259, %s258, 32
        %s261 = smul.u32 128, %s260
        %p262 = scmp.lt.s32.totalorder %s257, 37
        %s263 = scalar_select %p262, %s257, 37
        %s264 = smul.addr %s263, 8
        %s265 = scalar_lea.vmem %s0, %s264
        %p266 = pneg %p44
        %p267 = pneg %p41
        %p268 = pneg %p65
        %p269 = pneg %p62
        %p270 = pneg %p86
        %p271 = pneg %p83
        %p272 = pneg %p107
        %p273 = pneg %p104
        %p274 = pneg %p128
        %p275 = pneg %p125
        %p276 = pneg %p149
        %p277 = pneg %p146
        %p278 = pneg %p170
        %p279 = pneg %p167
        %p280 = pneg %p196
        %p281 = pneg %p193
        %s282 = sand.u32 %s183, 1
        %s283 = scalar_lea.sflag [#allocation4], %s282
        %s284 = sand.u32 %s183, 1
        %s285 = smul.addr %s284, 2
        %s286 = scalar_lea.vmem [#allocation3], %s285
        %s287 = smul.u32 32, %s23
        %s288 = ssub.s32 38, %s287
        %p289 = scmp.lt.s32.totalorder %s288, 32
        %s290 = scalar_select %p289, %s288, 32
        %s291 = smul.u32 128, %s290
        %p292 = scmp.lt.s32.totalorder %s287, 37
        %s293 = scalar_select %p292, %s287, 37
        %s294 = smul.addr %s293, 8
        %s295 = scalar_lea.vmem %s0, %s294
        %s296 = smul.u32 32, %s23
        %s297 = ssub.s32 38, %s296
        %p298 = scmp.lt.s32.totalorder %s297, 32
        %s299 = scalar_select %p298, %s297, 32
        %s300 = smul.u32 128, %s299
        %s301 = smul.u32 2, %s23
        %s302 = ssub.s32 3, %s301
        %p303 = scmp.lt.s32.totalorder %s302, 2
        %s304 = scalar_select %p303, %s302, 2
        %s305 = smul.u32 16, %s304
        %v306 = vld [vmem:[%s295] sm:$0xff]
        %v307 = vld [vmem:[%s295 + $0x8] sm:$0xff]
        %v308 = vld [vmem:[%s295 + $0x10] sm:$0xff]
        %v309 = vld [vmem:[%s295 + $0x18] sm:$0xff]
        %v310 = vld [vmem:[%s295 + $0x20] sm:$0xff]
        %v311 = vld [vmem:[%s295 + $0x28] sm:$0xff]
        %v312 = vld [vmem:[%s295 + $0x30] sm:$0xff]
        %v313 = vld [vmem:[%s295 + $0x38] sm:$0xff]
        %v314 = vld [vmem:[%s295 + $0x40] sm:$0xff]
        %v315 = vld [vmem:[%s295 + $0x48] sm:$0xff]
        %v316 = vld [vmem:[%s295 + $0x50] sm:$0xff]
        %v317 = vld [vmem:[%s295 + $0x58] sm:$0xff]
        %v318 = vld [vmem:[%s295 + $0x60] sm:$0xff]
        %v319 = vld [vmem:[%s295 + $0x68] sm:$0xff]
        %v320 = vld [vmem:[%s295 + $0x70] sm:$0xff]
        %v321 = vld [vmem:[%s295 + $0x78] sm:$0xff]
        %v322 = vld [vmem:[%s295 + $0x80] sm:$0xff]
        %v323 = vld [vmem:[%s295 + $0x88] sm:$0xff]
        %v324 = vld [vmem:[%s295 + $0x90] sm:$0xff]
        %v325 = vld [vmem:[%s295 + $0x98] sm:$0xff]
        %v326 = vld [vmem:[%s295 + $0xa0] sm:$0xff]
        %v327 = vld [vmem:[%s295 + $0xa8] sm:$0xff]
        %v328 = vld [vmem:[%s295 + $0xb0] sm:$0xff]
        %v329 = vld [vmem:[%s295 + $0xb8] sm:$0xff]
        %v330 = vld [vmem:[%s295 + $0xc0] sm:$0xff]
        %v331 = vld [vmem:[%s295 + $0xc8] sm:$0xff]
        %v332 = vld [vmem:[%s295 + $0xd0] sm:$0xff]
        %v333 = vld [vmem:[%s295 + $0xd8] sm:$0xff]
        %v334 = vld [vmem:[%s295 + $0xe0] sm:$0xff]
        %v335 = vld [vmem:[%s295 + $0xe8] sm:$0xff]
        %v336 = vld [vmem:[%s295 + $0xf0] sm:$0xff]
        %v337 = vld [vmem:[%s295 + $0xf8] sm:$0xff]
        %v338 = vld [vmem:[%s1] sm:$0xff]
        %v339 = vld [vmem:[%s1 + $0x8] sm:$0xff]
        %v340 = vld [vmem:[%s1 + $0x10] sm:$0xff]
        %v341 = vld [vmem:[%s1 + $0x18] sm:$0xff]
        %v342 = vld [vmem:[%s2] sm:$0x1]
        %v344 = vlaneseq
        %v345 = vshrl.u32 %v344, 7
        %v346 = vsub.s32 0, %v345
        %v347 = vrot.slane %v342, %v346
        %vm349 = vcmask 261120
        %v351 = vsel %vm349, %v306, 0
        %v354 = vsel %vm349, %v307, 0
        %v357 = vsel %vm349, %v308, 0
        %v360 = vsel %vm349, %v309, 0
        %v363 = vsel %vm349, %v310, 0
        %v366 = vsel %vm349, %v311, 0
        %v369 = vsel %vm349, %v312, 0
        %v372 = vsel %vm349, %v313, 0
        %v375 = vsel %vm349, %v314, 0
        %v378 = vsel %vm349, %v315, 0
        %v381 = vsel %vm349, %v316, 0
        %v384 = vsel %vm349, %v317, 0
        %v387 = vsel %vm349, %v318, 0
        %v390 = vsel %vm349, %v319, 0
        %v393 = vsel %vm349, %v320, 0
        %v396 = vsel %vm349, %v321, 0
        %v399 = vsel %vm349, %v322, 0
        %v402 = vsel %vm349, %v323, 0
        %v405 = vsel %vm349, %v324, 0
        %v408 = vsel %vm349, %v325, 0
        %v411 = vsel %vm349, %v326, 0
        %v414 = vsel %vm349, %v327, 0
        %v417 = vsel %vm349, %v328, 0
        %v420 = vsel %vm349, %v329, 0
        %v423 = vsel %vm349, %v330, 0
        %v426 = vsel %vm349, %v331, 0
        %v429 = vsel %vm349, %v332, 0
        %v432 = vsel %vm349, %v333, 0
        %v435 = vsel %vm349, %v334, 0
        %v438 = vsel %vm349, %v335, 0
        %v441 = vsel %vm349, %v336, 0
        %v444 = vsel %vm349, %v337, 0
        %446 = vmatprep.subr.mxu0 0.0
        %447 = vmatpush1.msra.mxu0 %v338
        %448 = vmatprep.subr.mxu0 0.0
        %449 = vmatpush1.msra.mxu0 %v339
        %450 = vmatprep.subr.mxu0 0.0
        %451 = vmatpush1.msra.mxu0 %v340
        %452 = vmatprep.subr.mxu0 0.0
        %453 = vmatpush1.msra.mxu0 %v341
        %454 = vmatprep.subr.mxu0 0.0
        %455 = vmatpush1.msra.mxu0 0.0
        %456 = vmatprep.subr.mxu0 0.0
        %457 = vmatpush1.msra.mxu0 0.0
        %458 = vmatprep.subr.mxu0 0.0
        %459 = vmatpush1.msra.mxu0 0.0
        %460 = vmatprep.subr.mxu0 0.0
        %461 = vmatpush1.msra.mxu0 0.0
        %462 = vmatprep.subr.mxu0 0.0
        %463 = vmatpush1.msra.mxu0 0.0
        %464 = vmatprep.subr.mxu0 0.0
        %465 = vmatpush1.msra.mxu0 0.0
        %466 = vmatprep.subr.mxu0 0.0
        %467 = vmatpush1.msra.mxu0 0.0
        %468 = vmatprep.subr.mxu0 0.0
        %469 = vmatpush1.msra.mxu0 0.0
        %470 = vmatprep.subr.mxu0 0.0
        %471 = vmatpush1.msra.mxu0 0.0
        %472 = vmatprep.subr.mxu0 0.0
        %473 = vmatpush1.msra.mxu0 0.0
        %474 = vmatprep.subr.mxu0 0.0
        %475 = vmatpush1.msra.mxu0 0.0
        %476 = vmatprep.subr.mxu0 0.0
        %477 = vmatpush1.msra.mxu0 0.0
        %478 = vmatprep.subr.mxu0 0.0
        %479 = vmatpush1.msra.mxu0 0.0
        %480 = vmatprep.subr.mxu0 0.0
        %481 = vmatpush1.msra.mxu0 0.0
        %482 = vmatprep.subr.mxu0 0.0
        %483 = vmatpush1.msra.mxu0 0.0
        %484 = vmatprep.subr.mxu0 0.0
        %485 = vmatpush1.msra.mxu0 0.0
        %486 = vmatprep.subr.mxu0 0.0
        %487 = vmatpush1.msra.mxu0 0.0
        %488 = vmatprep.subr.mxu0 0.0
        %489 = vmatpush1.msra.mxu0 0.0
        %490 = vmatprep.subr.mxu0 0.0
        %491 = vmatpush1.msra.mxu0 0.0
        %492 = vmatprep.subr.mxu0 0.0
        %493 = vmatpush1.msra.mxu0 0.0
        %494 = vmatprep.subr.mxu0 0.0
        %495 = vmatpush1.msra.mxu0 0.0
        %496 = vmatprep.subr.mxu0 0.0
        %497 = vmatpush1.msra.mxu0 0.0
        %498 = vmatprep.subr.mxu0 0.0
        %499 = vmatpush1.msra.mxu0 0.0
        %500 = vmatprep.subr.mxu0 0.0
        %501 = vmatpush1.msra.mxu0 0.0
        %502 = vmatprep.subr.mxu0 0.0
        %503 = vmatpush1.msra.mxu0 0.0
        %504 = vmatprep.subr.mxu0 0.0
        %505 = vmatpush1.msra.mxu0 0.0
        %506 = vmatprep.subr.mxu0 0.0
        %507 = vmatpush1.msra.mxu0 0.0
        %508 = vmatprep.subr.mxu0 0.0
        %509 = vmatpush1.msra.mxu0 0.0
        %510 = vmatprep.mubr.f32.mxu0 0.0
        %511 = vmatmul.mubr.f32.gmra.mrb[0].mxu0 %v351
        %v512 = vpop.f32.mrb[0].mxu0
        %v513 = vadd.f32 %v347, %v512
        %v514 = vpop.f32.mrb[0].mxu0
        %515 = vmatprep.mubr.f32.mxu0 0.0
        %516 = vmatmul.mubr.f32.gmra.mrb[0].mxu0 %v354
        %v517 = vpop.f32.mrb[0].mxu0
        %v518 = vadd.f32 %v347, %v517
        %v519 = vpop.f32.mrb[0].mxu0
        %520 = vmatprep.mubr.f32.mxu0 0.0
        %521 = vmatmul.mubr.f32.gmra.mrb[0].mxu0 %v357
        %v522 = vpop.f32.mrb[0].mxu0
        %v523 = vadd.f32 %v347, %v522
        %v524 = vpop.f32.mrb[0].mxu0
        %525 = vmatprep.mubr.f32.mxu0 0.0
        %526 = vmatmul.mubr.f32.gmra.mrb[0].mxu0 %v360
        %v527 = vpop.f32.mrb[0].mxu0
        %v528 = vadd.f32 %v347, %v527
        %v529 = vpop.f32.mrb[0].mxu0
        %530 = vmatprep.mubr.f32.mxu0 0.0
        %531 = vmatmul.mubr.f32.gmra.mrb[0].mxu0 %v363
        %v532 = vpop.f32.mrb[0].mxu0
        %v533 = vadd.f32 %v347, %v532
        %v534 = vpop.f32.mrb[0].mxu0
        %535 = vmatprep.mubr.f32.mxu0 0.0
        %536 = vmatmul.mubr.f32.gmra.mrb[0].mxu0 %v366
        %v537 = vpop.f32.mrb[0].mxu0
        %v538 = vadd.f32 %v347, %v537
        %v539 = vpop.f32.mrb[0].mxu0
        %540 = vmatprep.mubr.f32.mxu0 0.0
        %541 = vmatmul.mubr.f32.gmra.mrb[0].mxu0 %v369
        %v542 = vpop.f32.mrb[0].mxu0
        %v543 = vadd.f32 %v347, %v542
        %v544 = vpop.f32.mrb[0].mxu0
        %545 = vmatprep.mubr.f32.mxu0 0.0
        %546 = vmatmul.mubr.f32.gmra.mrb[0].mxu0 %v372
        %v547 = vpop.f32.mrb[0].mxu0
        %v548 = vadd.f32 %v347, %v547
        %v549 = vpop.f32.mrb[0].mxu0
        %550 = vmatprep.mubr.f32.mxu0 0.0
        %551 = vmatmul.mubr.f32.gmra.mrb[0].mxu0 %v375
        %v552 = vpop.f32.mrb[0].mxu0
        %v553 = vadd.f32 %v347, %v552
        %v554 = vpop.f32.mrb[0].mxu0
        %555 = vmatprep.mubr.f32.mxu0 0.0
        %556 = vmatmul.mubr.f32.gmra.mrb[0].mxu0 %v378
        %v557 = vpop.f32.mrb[0].mxu0
        %v558 = vadd.f32 %v347, %v557
        %v559 = vpop.f32.mrb[0].mxu0
        %560 = vmatprep.mubr.f32.mxu0 0.0
        %561 = vmatmul.mubr.f32.gmra.mrb[0].mxu0 %v381
        %v562 = vpop.f32.mrb[0].mxu0
        %v563 = vadd.f32 %v347, %v562
        %v564 = vpop.f32.mrb[0].mxu0
        %565 = vmatprep.mubr.f32.mxu0 0.0
        %566 = vmatmul.mubr.f32.gmra.mrb[0].mxu0 %v384
        %v567 = vpop.f32.mrb[0].mxu0
        %v568 = vadd.f32 %v347, %v567
        %v569 = vpop.f32.mrb[0].mxu0
        %570 = vmatprep.mubr.f32.mxu0 0.0
        %571 = vmatmul.mubr.f32.gmra.mrb[0].mxu0 %v387
        %v572 = vpop.f32.mrb[0].mxu0
        %v573 = vadd.f32 %v347, %v572
        %v574 = vpop.f32.mrb[0].mxu0
        %575 = vmatprep.mubr.f32.mxu0 0.0
        %576 = vmatmul.mubr.f32.gmra.mrb[0].mxu0 %v390
        %v577 = vpop.f32.mrb[0].mxu0
        %v578 = vadd.f32 %v347, %v577
        %v579 = vpop.f32.mrb[0].mxu0
        %580 = vmatprep.mubr.f32.mxu0 0.0
        %581 = vmatmul.mubr.f32.gmra.mrb[0].mxu0 %v393
        %v582 = vpop.f32.mrb[0].mxu0
        %v583 = vadd.f32 %v347, %v582
        %v584 = vpop.f32.mrb[0].mxu0
        %585 = vmatprep.mubr.f32.mxu0 0.0
        %586 = vmatmul.mubr.f32.gmra.mrb[0].mxu0 %v396
        %v587 = vpop.f32.mrb[0].mxu0
        %v588 = vadd.f32 %v347, %v587
        %v589 = vpop.f32.mrb[0].mxu0
        %590 = vmatprep.mubr.f32.mxu0 0.0
        %591 = vmatmul.mubr.f32.gmra.mrb[0].mxu0 %v399
        %v592 = vpop.f32.mrb[0].mxu0
        %v593 = vadd.f32 %v347, %v592
        %v594 = vpop.f32.mrb[0].mxu0
        %595 = vmatprep.mubr.f32.mxu0 0.0
        %596 = vmatmul.mubr.f32.gmra.mrb[0].mxu0 %v402
        %v597 = vpop.f32.mrb[0].mxu0
        %v598 = vadd.f32 %v347, %v597
        %v599 = vpop.f32.mrb[0].mxu0
        %600 = vmatprep.mubr.f32.mxu0 0.0
        %601 = vmatmul.mubr.f32.gmra.mrb[0].mxu0 %v405
        %v602 = vpop.f32.mrb[0].mxu0
        %v603 = vadd.f32 %v347, %v602
        %v604 = vpop.f32.mrb[0].mxu0
        %605 = vmatprep.mubr.f32.mxu0 0.0
        %606 = vmatmul.mubr.f32.gmra.mrb[0].mxu0 %v408
        %v607 = vpop.f32.mrb[0].mxu0
        %v608 = vadd.f32 %v347, %v607
        %v609 = vpop.f32.mrb[0].mxu0
        %610 = vmatprep.mubr.f32.mxu0 0.0
        %611 = vmatmul.mubr.f32.gmra.mrb[0].mxu0 %v411
        %v612 = vpop.f32.mrb[0].mxu0
        %v613 = vadd.f32 %v347, %v612
        %v614 = vpop.f32.mrb[0].mxu0
        %615 = vmatprep.mubr.f32.mxu0 0.0
        %616 = vmatmul.mubr.f32.gmra.mrb[0].mxu0 %v414
        %v617 = vpop.f32.mrb[0].mxu0
        %v618 = vadd.f32 %v347, %v617
        %v619 = vpop.f32.mrb[0].mxu0
        %620 = vmatprep.mubr.f32.mxu0 0.0
        %621 = vmatmul.mubr.f32.gmra.mrb[0].mxu0 %v417
        %v622 = vpop.f32.mrb[0].mxu0
        %v623 = vadd.f32 %v347, %v622
        %v624 = vpop.f32.mrb[0].mxu0
        %625 = vmatprep.mubr.f32.mxu0 0.0
        %626 = vmatmul.mubr.f32.gmra.mrb[0].mxu0 %v420
        %v627 = vpop.f32.mrb[0].mxu0
        %v628 = vadd.f32 %v347, %v627
        %v629 = vpop.f32.mrb[0].mxu0
        %630 = vmatprep.mubr.f32.mxu0 0.0
        %631 = vmatmul.mubr.f32.gmra.mrb[0].mxu0 %v423
        %v632 = vpop.f32.mrb[0].mxu0
        %v633 = vadd.f32 %v347, %v632
        %v634 = vpop.f32.mrb[0].mxu0
        %635 = vmatprep.mubr.f32.mxu0 0.0
        %636 = vmatmul.mubr.f32.gmra.mrb[0].mxu0 %v426
        %v637 = vpop.f32.mrb[0].mxu0
        %v638 = vadd.f32 %v347, %v637
        %v639 = vpop.f32.mrb[0].mxu0
        %640 = vmatprep.mubr.f32.mxu0 0.0
        %641 = vmatmul.mubr.f32.gmra.mrb[0].mxu0 %v429
        %v642 = vpop.f32.mrb[0].mxu0
        %v643 = vadd.f32 %v347, %v642
        %v644 = vpop.f32.mrb[0].mxu0
        %645 = vmatprep.mubr.f32.mxu0 0.0
        %646 = vmatmul.mubr.f32.gmra.mrb[0].mxu0 %v432
        %v647 = vpop.f32.mrb[0].mxu0
        %v648 = vadd.f32 %v347, %v647
        %v649 = vpop.f32.mrb[0].mxu0
        %650 = vmatprep.mubr.f32.mxu0 0.0
        %651 = vmatmul.mubr.f32.gmra.mrb[0].mxu0 %v435
        %v652 = vpop.f32.mrb[0].mxu0
        %v653 = vadd.f32 %v347, %v652
        %v654 = vpop.f32.mrb[0].mxu0
        %655 = vmatprep.mubr.f32.mxu0 0.0
        %656 = vmatmul.mubr.f32.gmra.mrb[0].mxu0 %v438
        %v657 = vpop.f32.mrb[0].mxu0
        %v658 = vadd.f32 %v347, %v657
        %v659 = vpop.f32.mrb[0].mxu0
        %660 = vmatprep.mubr.f32.mxu0 0.0
        %661 = vmatmul.mubr.f32.gmra.mrb[0].mxu0 %v441
        %v662 = vpop.f32.mrb[0].mxu0
        %v663 = vadd.f32 %v347, %v662
        %v664 = vpop.f32.mrb[0].mxu0
        %665 = vmatprep.mubr.f32.mxu0 0.0
        %666 = vmatmul.mubr.f32.gmra.mrb[0].mxu0 %v444
        %v667 = vpop.f32.mrb[0].mxu0
        %v668 = vadd.f32 %v347, %v667
        %v669 = vpop.f32.mrb[0].mxu0
        %670 = vdwg.mxu0
        %v671 = vmax.f32 %v513, 0.0
        %v672 = vmax.f32 %v518, 0.0
        %v673 = vmax.f32 %v523, 0.0
        %v674 = vmax.f32 %v528, 0.0
        %v675 = vmax.f32 %v533, 0.0
        %v676 = vmax.f32 %v538, 0.0
        %v677 = vmax.f32 %v543, 0.0
        %v678 = vmax.f32 %v548, 0.0
        %v679 = vmax.f32 %v553, 0.0
        %v680 = vmax.f32 %v558, 0.0
        %v681 = vmax.f32 %v563, 0.0
        %v682 = vmax.f32 %v568, 0.0
        %v683 = vmax.f32 %v573, 0.0
        %v684 = vmax.f32 %v578, 0.0
        %v685 = vmax.f32 %v583, 0.0
        %v686 = vmax.f32 %v588, 0.0
        %v687 = vmax.f32 %v593, 0.0
        %v688 = vmax.f32 %v598, 0.0
        %v689 = vmax.f32 %v603, 0.0
        %v690 = vmax.f32 %v608, 0.0
        %v691 = vmax.f32 %v613, 0.0
        %v692 = vmax.f32 %v618, 0.0
        %v693 = vmax.f32 %v623, 0.0
        %v694 = vmax.f32 %v628, 0.0
        %v695 = vmax.f32 %v633, 0.0
        %v696 = vmax.f32 %v638, 0.0
        %v697 = vmax.f32 %v643, 0.0
        %v698 = vmax.f32 %v648, 0.0
        %v699 = vmax.f32 %v653, 0.0
        %v700 = vmax.f32 %v658, 0.0
        %v701 = vmax.f32 %v663, 0.0
        %v702 = vmax.f32 %v668, 0.0
        %v703 = vld [vmem:[%s3] sm:$0xff]
        %v704 = vld [vmem:[%s3 + $0x8] sm:$0xff]
        %v705 = vld [vmem:[%s3 + $0x10] sm:$0xff]
        %v706 = vld [vmem:[%s3 + $0x18] sm:$0xff]
        %v707 = vld [vmem:[%s3 + $0x20] sm:$0xff]
        %v708 = vld [vmem:[%s3 + $0x28] sm:$0xff]
        %v709 = vld [vmem:[%s3 + $0x30] sm:$0xff]
        %v710 = vld [vmem:[%s3 + $0x38] sm:$0xff]
        %v711 = vld [vmem:[%s3 + $0x40] sm:$0xff]
        %v712 = vld [vmem:[%s3 + $0x48] sm:$0xff]
        %v713 = vld [vmem:[%s3 + $0x50] sm:$0xff]
        %v714 = vld [vmem:[%s3 + $0x58] sm:$0xff]
        %v715 = vld [vmem:[%s3 + $0x60] sm:$0xff]
        %v716 = vld [vmem:[%s3 + $0x68] sm:$0xff]
        %v717 = vld [vmem:[%s3 + $0x70] sm:$0xff]
        %v718 = vld [vmem:[%s3 + $0x78] sm:$0xff]
        %v719 = vld [vmem:[%s4] sm:$0x1]
        %v721 = vlaneseq
        %v722 = vshrl.u32 %v721, 7
        %v723 = vsub.s32 0, %v722
        %v724 = vrot.slane %v719, %v723
        %726 = vmatprep.subr.mxu0 0.0
        %727 = vmatpush1.msra.mxu0 %v703
        %728 = vmatprep.subr.mxu0 0.0
        %729 = vmatpush1.msra.mxu0 %v704
        %730 = vmatprep.subr.mxu0 0.0
        %731 = vmatpush1.msra.mxu0 %v705
        %732 = vmatprep.subr.mxu0 0.0
        %733 = vmatpush1.msra.mxu0 %v706
        %734 = vmatprep.subr.mxu0 0.0
        %735 = vmatpush1.msra.mxu0 %v707
        %736 = vmatprep.subr.mxu0 0.0
        %737 = vmatpush1.msra.mxu0 %v708
        %738 = vmatprep.subr.mxu0 0.0
        %739 = vmatpush1.msra.mxu0 %v709
        %740 = vmatprep.subr.mxu0 0.0
        %741 = vmatpush1.msra.mxu0 %v710
        %742 = vmatprep.subr.mxu0 0.0
        %743 = vmatpush1.msra.mxu0 %v711
        %744 = vmatprep.subr.mxu0 0.0
        %745 = vmatpush1.msra.mxu0 %v712
        %746 = vmatprep.subr.mxu0 0.0
        %747 = vmatpush1.msra.mxu0 %v713
        %748 = vmatprep.subr.mxu0 0.0
        %749 = vmatpush1.msra.mxu0 %v714
        %750 = vmatprep.subr.mxu0 0.0
        %751 = vmatpush1.msra.mxu0 %v715
        %752 = vmatprep.subr.mxu0 0.0
        %753 = vmatpush1.msra.mxu0 %v716
        %754 = vmatprep.subr.mxu0 0.0
        %755 = vmatpush1.msra.mxu0 %v717
        %756 = vmatprep.subr.mxu0 0.0
        %757 = vmatpush1.msra.mxu0 %v718
        %758 = vmatprep.subr.mxu0 0.0
        %759 = vmatpush1.msra.mxu0 0.0
        %760 = vmatprep.subr.mxu0 0.0
        %761 = vmatpush1.msra.mxu0 0.0
        %762 = vmatprep.subr.mxu0 0.0
        %763 = vmatpush1.msra.mxu0 0.0
        %764 = vmatprep.subr.mxu0 0.0
        %765 = vmatpush1.msra.mxu0 0.0
        %766 = vmatprep.subr.mxu0 0.0
        %767 = vmatpush1.msra.mxu0 0.0
        %768 = vmatprep.subr.mxu0 0.0
        %769 = vmatpush1.msra.mxu0 0.0
        %770 = vmatprep.subr.mxu0 0.0
        %771 = vmatpush1.msra.mxu0 0.0
        %772 = vmatprep.subr.mxu0 0.0
        %773 = vmatpush1.msra.mxu0 0.0
        %774 = vmatprep.subr.mxu0 0.0
        %775 = vmatpush1.msra.mxu0 0.0
        %776 = vmatprep.subr.mxu0 0.0
        %777 = vmatpush1.msra.mxu0 0.0
        %778 = vmatprep.subr.mxu0 0.0
        %779 = vmatpush1.msra.mxu0 0.0
        %780 = vmatprep.subr.mxu0 0.0
        %781 = vmatpush1.msra.mxu0 0.0
        %782 = vmatprep.subr.mxu0 0.0
        %783 = vmatpush1.msra.mxu0 0.0
        %784 = vmatprep.subr.mxu0 0.0
        %785 = vmatpush1.msra.mxu0 0.0
        %786 = vmatprep.subr.mxu0 0.0
        %787 = vmatpush1.msra.mxu0 0.0
        %788 = vmatprep.subr.mxu0 0.0
        %789 = vmatpush1.msra.mxu0 0.0
        %790 = vmatprep.mubr.f32.mxu0 0.0
        %791 = vmatmul.mubr.f32.gmra.mrb[0].mxu0 %v671
        %v792 = vpop.f32.mrb[0].mxu0
        %v793 = vadd.f32 %v724, %v792
        %v794 = vpop.f32.mrb[0].mxu0
        %795 = vmatprep.mubr.f32.mxu0 0.0
        %796 = vmatmul.mubr.f32.gmra.mrb[0].mxu0 %v672
        %v797 = vpop.f32.mrb[0].mxu0
        %v798 = vadd.f32 %v724, %v797
        %v799 = vpop.f32.mrb[0].mxu0
        %800 = vmatprep.mubr.f32.mxu0 0.0
        %801 = vmatmul.mubr.f32.gmra.mrb[0].mxu0 %v673
        %v802 = vpop.f32.mrb[0].mxu0
        %v803 = vadd.f32 %v724, %v802
        %v804 = vpop.f32.mrb[0].mxu0
        %805 = vmatprep.mubr.f32.mxu0 0.0
        %806 = vmatmul.mubr.f32.gmra.mrb[0].mxu0 %v674
        %v807 = vpop.f32.mrb[0].mxu0
        %v808 = vadd.f32 %v724, %v807
        %v809 = vpop.f32.mrb[0].mxu0
        %810 = vmatprep.mubr.f32.mxu0 0.0
        %811 = vmatmul.mubr.f32.gmra.mrb[0].mxu0 %v675
        %v812 = vpop.f32.mrb[0].mxu0
        %v813 = vadd.f32 %v724, %v812
        %v814 = vpop.f32.mrb[0].mxu0
        %815 = vmatprep.mubr.f32.mxu0 0.0
        %816 = vmatmul.mubr.f32.gmra.mrb[0].mxu0 %v676
        %v817 = vpop.f32.mrb[0].mxu0
        %v818 = vadd.f32 %v724, %v817
        %v819 = vpop.f32.mrb[0].mxu0
        %820 = vmatprep.mubr.f32.mxu0 0.0
        %821 = vmatmul.mubr.f32.gmra.mrb[0].mxu0 %v677
        %v822 = vpop.f32.mrb[0].mxu0
        %v823 = vadd.f32 %v724, %v822
        %v824 = vpop.f32.mrb[0].mxu0
        %825 = vmatprep.mubr.f32.mxu0 0.0
        %826 = vmatmul.mubr.f32.gmra.mrb[0].mxu0 %v678
        %v827 = vpop.f32.mrb[0].mxu0
        %v828 = vadd.f32 %v724, %v827
        %v829 = vpop.f32.mrb[0].mxu0
        %830 = vmatprep.mubr.f32.mxu0 0.0
        %831 = vmatmul.mubr.f32.gmra.mrb[0].mxu0 %v679
        %v832 = vpop.f32.mrb[0].mxu0
        %v833 = vadd.f32 %v724, %v832
        %v834 = vpop.f32.mrb[0].mxu0
        %835 = vmatprep.mubr.f32.mxu0 0.0
        %836 = vmatmul.mubr.f32.gmra.mrb[0].mxu0 %v680
        %v837 = vpop.f32.mrb[0].mxu0
        %v838 = vadd.f32 %v724, %v837
        %v839 = vpop.f32.mrb[0].mxu0
        %840 = vmatprep.mubr.f32.mxu0 0.0
        %841 = vmatmul.mubr.f32.gmra.mrb[0].mxu0 %v681
        %v842 = vpop.f32.mrb[0].mxu0
        %v843 = vadd.f32 %v724, %v842
        %v844 = vpop.f32.mrb[0].mxu0
        %845 = vmatprep.mubr.f32.mxu0 0.0
        %846 = vmatmul.mubr.f32.gmra.mrb[0].mxu0 %v682
        %v847 = vpop.f32.mrb[0].mxu0
        %v848 = vadd.f32 %v724, %v847
        %v849 = vpop.f32.mrb[0].mxu0
        %850 = vmatprep.mubr.f32.mxu0 0.0
        %851 = vmatmul.mubr.f32.gmra.mrb[0].mxu0 %v683
        %v852 = vpop.f32.mrb[0].mxu0
        %v853 = vadd.f32 %v724, %v852
        %v854 = vpop.f32.mrb[0].mxu0
        %855 = vmatprep.mubr.f32.mxu0 0.0
        %856 = vmatmul.mubr.f32.gmra.mrb[0].mxu0 %v684
        %v857 = vpop.f32.mrb[0].mxu0
        %v858 = vadd.f32 %v724, %v857
        %v859 = vpop.f32.mrb[0].mxu0
        %860 = vmatprep.mubr.f32.mxu0 0.0
        %861 = vmatmul.mubr.f32.gmra.mrb[0].mxu0 %v685
        %v862 = vpop.f32.mrb[0].mxu0
        %v863 = vadd.f32 %v724, %v862
        %v864 = vpop.f32.mrb[0].mxu0
        %865 = vmatprep.mubr.f32.mxu0 0.0
        %866 = vmatmul.mubr.f32.gmra.mrb[0].mxu0 %v686
        %v867 = vpop.f32.mrb[0].mxu0
        %v868 = vadd.f32 %v724, %v867
        %v869 = vpop.f32.mrb[0].mxu0
        %870 = vmatprep.mubr.f32.mxu0 0.0
        %871 = vmatmul.mubr.f32.gmra.mrb[0].mxu0 %v687
        %v872 = vpop.f32.mrb[0].mxu0
        %v873 = vadd.f32 %v724, %v872
        %v874 = vpop.f32.mrb[0].mxu0
        %875 = vmatprep.mubr.f32.mxu0 0.0
        %876 = vmatmul.mubr.f32.gmra.mrb[0].mxu0 %v688
        %v877 = vpop.f32.mrb[0].mxu0
        %v878 = vadd.f32 %v724, %v877
        %v879 = vpop.f32.mrb[0].mxu0
        %880 = vmatprep.mubr.f32.mxu0 0.0
        %881 = vmatmul.mubr.f32.gmra.mrb[0].mxu0 %v689
        %v882 = vpop.f32.mrb[0].mxu0
        %v883 = vadd.f32 %v724, %v882
        %v884 = vpop.f32.mrb[0].mxu0
        %885 = vmatprep.mubr.f32.mxu0 0.0
        %886 = vmatmul.mubr.f32.gmra.mrb[0].mxu0 %v690
        %v887 = vpop.f32.mrb[0].mxu0
        %v888 = vadd.f32 %v724, %v887
        %v889 = vpop.f32.mrb[0].mxu0
        %890 = vmatprep.mubr.f32.mxu0 0.0
        %891 = vmatmul.mubr.f32.gmra.mrb[0].mxu0 %v691
        %v892 = vpop.f32.mrb[0].mxu0
        %v893 = vadd.f32 %v724, %v892
        %v894 = vpop.f32.mrb[0].mxu0
        %895 = vmatprep.mubr.f32.mxu0 0.0
        %896 = vmatmul.mubr.f32.gmra.mrb[0].mxu0 %v692
        %v897 = vpop.f32.mrb[0].mxu0
        %v898 = vadd.f32 %v724, %v897
        %v899 = vpop.f32.mrb[0].mxu0
        %900 = vmatprep.mubr.f32.mxu0 0.0
        %901 = vmatmul.mubr.f32.gmra.mrb[0].mxu0 %v693
        %v902 = vpop.f32.mrb[0].mxu0
        %v903 = vadd.f32 %v724, %v902
        %v904 = vpop.f32.mrb[0].mxu0
        %905 = vmatprep.mubr.f32.mxu0 0.0
        %906 = vmatmul.mubr.f32.gmra.mrb[0].mxu0 %v694
        %v907 = vpop.f32.mrb[0].mxu0
        %v908 = vadd.f32 %v724, %v907
        %v909 = vpop.f32.mrb[0].mxu0
        %910 = vmatprep.mubr.f32.mxu0 0.0
        %911 = vmatmul.mubr.f32.gmra.mrb[0].mxu0 %v695
        %v912 = vpop.f32.mrb[0].mxu0
        %v913 = vadd.f32 %v724, %v912
        %v914 = vpop.f32.mrb[0].mxu0
        %915 = vmatprep.mubr.f32.mxu0 0.0
        %916 = vmatmul.mubr.f32.gmra.mrb[0].mxu0 %v696
        %v917 = vpop.f32.mrb[0].mxu0
        %v918 = vadd.f32 %v724, %v917
        %v919 = vpop.f32.mrb[0].mxu0
        %920 = vmatprep.mubr.f32.mxu0 0.0
        %921 = vmatmul.mubr.f32.gmra.mrb[0].mxu0 %v697
        %v922 = vpop.f32.mrb[0].mxu0
        %v923 = vadd.f32 %v724, %v922
        %v924 = vpop.f32.mrb[0].mxu0
        %925 = vmatprep.mubr.f32.mxu0 0.0
        %926 = vmatmul.mubr.f32.gmra.mrb[0].mxu0 %v698
        %v927 = vpop.f32.mrb[0].mxu0
        %v928 = vadd.f32 %v724, %v927
        %v929 = vpop.f32.mrb[0].mxu0
        %930 = vmatprep.mubr.f32.mxu0 0.0
        %931 = vmatmul.mubr.f32.gmra.mrb[0].mxu0 %v699
        %v932 = vpop.f32.mrb[0].mxu0
        %v933 = vadd.f32 %v724, %v932
        %v934 = vpop.f32.mrb[0].mxu0
        %935 = vmatprep.mubr.f32.mxu0 0.0
        %936 = vmatmul.mubr.f32.gmra.mrb[0].mxu0 %v700
        %v937 = vpop.f32.mrb[0].mxu0
        %v938 = vadd.f32 %v724, %v937
        %v939 = vpop.f32.mrb[0].mxu0
        %940 = vmatprep.mubr.f32.mxu0 0.0
        %941 = vmatmul.mubr.f32.gmra.mrb[0].mxu0 %v701
        %v942 = vpop.f32.mrb[0].mxu0
        %v943 = vadd.f32 %v724, %v942
        %v944 = vpop.f32.mrb[0].mxu0
        %945 = vmatprep.mubr.f32.mxu0 0.0
        %946 = vmatmul.mubr.f32.gmra.mrb[0].mxu0 %v702
        %v947 = vpop.f32.mrb[0].mxu0
        %v948 = vadd.f32 %v724, %v947
        %v949 = vpop.f32.mrb[0].mxu0
        %950 = vdwg.mxu0
        %v951 = vmax.f32 %v793, 0.0
        %v952 = vmax.f32 %v798, 0.0
        %v953 = vmax.f32 %v803, 0.0
        %v954 = vmax.f32 %v808, 0.0
        %v955 = vmax.f32 %v813, 0.0
        %v956 = vmax.f32 %v818, 0.0
        %v957 = vmax.f32 %v823, 0.0
        %v958 = vmax.f32 %v828, 0.0
        %v959 = vmax.f32 %v833, 0.0
        %v960 = vmax.f32 %v838, 0.0
        %v961 = vmax.f32 %v843, 0.0
        %v962 = vmax.f32 %v848, 0.0
        %v963 = vmax.f32 %v853, 0.0
        %v964 = vmax.f32 %v858, 0.0
        %v965 = vmax.f32 %v863, 0.0
        %v966 = vmax.f32 %v868, 0.0
        %v967 = vmax.f32 %v873, 0.0
        %v968 = vmax.f32 %v878, 0.0
        %v969 = vmax.f32 %v883, 0.0
        %v970 = vmax.f32 %v888, 0.0
        %v971 = vmax.f32 %v893, 0.0
        %v972 = vmax.f32 %v898, 0.0
        %v973 = vmax.f32 %v903, 0.0
        %v974 = vmax.f32 %v908, 0.0
        %v975 = vmax.f32 %v913, 0.0
        %v976 = vmax.f32 %v918, 0.0
        %v977 = vmax.f32 %v923, 0.0
        %v978 = vmax.f32 %v928, 0.0
        %v979 = vmax.f32 %v933, 0.0
        %v980 = vmax.f32 %v938, 0.0
        %v981 = vmax.f32 %v943, 0.0
        %v982 = vmax.f32 %v948, 0.0
        %983 = vxpose.xlu0.b32.start [1/16] %v951, 128
        %984 = vxpose.xlu0.b32.cont [2/16] %v952, 128
        %985 = vxpose.xlu0.b32.cont [3/16] %v953, 128
        %986 = vxpose.xlu0.b32.cont [4/16] %v954, 128
        %987 = vxpose.xlu0.b32.cont [5/16] %v955, 128
        %988 = vxpose.xlu0.b32.cont [6/16] %v956, 128
        %989 = vxpose.xlu0.b32.cont [7/16] %v957, 128
        %990 = vxpose.xlu0.b32.cont [8/16] %v958, 128
        %991 = vxpose.xlu0.b32.cont [9/16] %v959, 128
        %992 = vxpose.xlu0.b32.cont [10/16] %v960, 128
        %993 = vxpose.xlu0.b32.cont [11/16] %v961, 128
        %994 = vxpose.xlu0.b32.cont [12/16] %v962, 128
        %995 = vxpose.xlu0.b32.cont [13/16] %v963, 128
        %996 = vxpose.xlu0.b32.cont [14/16] %v964, 128
        %997 = vxpose.xlu0.b32.cont [15/16] %v965, 128
        %998 = vxpose.xlu0.b32.end [16/16] %v966, 128
        %v999 = vpop.trf.xlu0
        %v1000 = vpop.trf.xlu0
        %v1001 = vpop.trf.xlu0
        %v1002 = vpop.trf.xlu0
        %v1003 = vpop.trf.xlu0
        %v1004 = vpop.trf.xlu0
        %v1005 = vpop.trf.xlu0
        %v1006 = vpop.trf.xlu0
        %v1007 = vpop.trf.xlu0
        %v1008 = vpop.trf.xlu0
        %v1009 = vpop.trf.xlu0
        %v1010 = vpop.trf.xlu0
        %v1011 = vpop.trf.xlu0
        %v1012 = vpop.trf.xlu0
        %v1013 = vpop.trf.xlu0
        %v1014 = vpop.trf.xlu0
        %1015 = vxpose.xlu0.b32.start [1/16] %v967, 128
        %1016 = vxpose.xlu0.b32.cont [2/16] %v968, 128
        %1017 = vxpose.xlu0.b32.cont [3/16] %v969, 128
        %1018 = vxpose.xlu0.b32.cont [4/16] %v970, 128
        %1019 = vxpose.xlu0.b32.cont [5/16] %v971, 128
        %1020 = vxpose.xlu0.b32.cont [6/16] %v972, 128
        %1021 = vxpose.xlu0.b32.cont [7/16] %v973, 128
        %1022 = vxpose.xlu0.b32.cont [8/16] %v974, 128
        %1023 = vxpose.xlu0.b32.cont [9/16] %v975, 128
        %1024 = vxpose.xlu0.b32.cont [10/16] %v976, 128
        %1025 = vxpose.xlu0.b32.cont [11/16] %v977, 128
        %1026 = vxpose.xlu0.b32.cont [12/16] %v978, 128
        %1027 = vxpose.xlu0.b32.cont [13/16] %v979, 128
        %1028 = vxpose.xlu0.b32.cont [14/16] %v980, 128
        %1029 = vxpose.xlu0.b32.cont [15/16] %v981, 128
        %1030 = vxpose.xlu0.b32.end [16/16] %v982, 128
        %v1031 = vpop.trf.xlu0
        %v1032 = vpop.trf.xlu0
        %v1033 = vpop.trf.xlu0
        %v1034 = vpop.trf.xlu0
        %v1035 = vpop.trf.xlu0
        %v1036 = vpop.trf.xlu0
        %v1037 = vpop.trf.xlu0
        %v1038 = vpop.trf.xlu0
        %v1039 = vpop.trf.xlu0
        %v1040 = vpop.trf.xlu0
        %v1041 = vpop.trf.xlu0
        %v1042 = vpop.trf.xlu0
        %v1043 = vpop.trf.xlu0
        %v1044 = vpop.trf.xlu0
        %v1045 = vpop.trf.xlu0
        %v1046 = vpop.trf.xlu0
        %v1047 = vld [vmem:[%s5] sm:$0xff]
        %v1048 = vld [vmem:[%s5 + $0x8] sm:$0xff]
        %v1049 = vld [vmem:[%s5 + $0x10] sm:$0xff]
        %v1050 = vld [vmem:[%s5 + $0x18] sm:$0xff]
        %v1051 = vld [vmem:[%s5 + $0x20] sm:$0xff]
        %v1052 = vld [vmem:[%s5 + $0x28] sm:$0xff]
        %v1053 = vld [vmem:[%s5 + $0x30] sm:$0xff]
        %v1054 = vld [vmem:[%s5 + $0x38] sm:$0xff]
        %v1055 = vld [vmem:[%s5 + $0x40] sm:$0xff]
        %v1056 = vld [vmem:[%s5 + $0x48] sm:$0xff]
        %v1057 = vld [vmem:[%s5 + $0x50] sm:$0xff]
        %v1058 = vld [vmem:[%s5 + $0x58] sm:$0xff]
        %v1059 = vld [vmem:[%s5 + $0x60] sm:$0xff]
        %v1060 = vld [vmem:[%s5 + $0x68] sm:$0xff]
        %v1061 = vld [vmem:[%s5 + $0x70] sm:$0xff]
        %v1062 = vld [vmem:[%s5 + $0x78] sm:$0xff]
        %1064 = vset.pattern.permute.xlu0 0
        %1065 = vperm.xlu0 %1064, %v1047
        %v1066 = vpop.permute.xlu0 %1065
        %1069 = vset.pattern.permute.xlu0 0
        %1070 = vperm.xlu0 %1069, %v1048
        %v1071 = vpop.permute.xlu0 %1070
        %1074 = vset.pattern.permute.xlu0 0
        %1075 = vperm.xlu0 %1074, %v1049
        %v1076 = vpop.permute.xlu0 %1075
        %1079 = vset.pattern.permute.xlu0 0
        %1080 = vperm.xlu0 %1079, %v1050
        %v1081 = vpop.permute.xlu0 %1080
        %1084 = vset.pattern.permute.xlu0 0
        %1085 = vperm.xlu0 %1084, %v1051
        %v1086 = vpop.permute.xlu0 %1085
        %1089 = vset.pattern.permute.xlu0 0
        %1090 = vperm.xlu0 %1089, %v1052
        %v1091 = vpop.permute.xlu0 %1090
        %1094 = vset.pattern.permute.xlu0 0
        %1095 = vperm.xlu0 %1094, %v1053
        %v1096 = vpop.permute.xlu0 %1095
        %1099 = vset.pattern.permute.xlu0 0
        %1100 = vperm.xlu0 %1099, %v1054
        %v1101 = vpop.permute.xlu0 %1100
        %1104 = vset.pattern.permute.xlu0 0
        %1105 = vperm.xlu0 %1104, %v1055
        %v1106 = vpop.permute.xlu0 %1105
        %1109 = vset.pattern.permute.xlu0 0
        %1110 = vperm.xlu0 %1109, %v1056
        %v1111 = vpop.permute.xlu0 %1110
        %1114 = vset.pattern.permute.xlu0 0
        %1115 = vperm.xlu0 %1114, %v1057
        %v1116 = vpop.permute.xlu0 %1115
        %1119 = vset.pattern.permute.xlu0 0
        %1120 = vperm.xlu0 %1119, %v1058
        %v1121 = vpop.permute.xlu0 %1120
        %1124 = vset.pattern.permute.xlu0 0
        %1125 = vperm.xlu0 %1124, %v1059
        %v1126 = vpop.permute.xlu0 %1125
        %1129 = vset.pattern.permute.xlu0 0
        %1130 = vperm.xlu0 %1129, %v1060
        %v1131 = vpop.permute.xlu0 %1130
        %1134 = vset.pattern.permute.xlu0 0
        %1135 = vperm.xlu0 %1134, %v1061
        %v1136 = vpop.permute.xlu0 %1135
        %1139 = vset.pattern.permute.xlu0 0
        %1140 = vperm.xlu0 %1139, %v1062
        %v1141 = vpop.permute.xlu0 %1140
        %v1143 = vmul.f32 %v999, %v1066
        %v1144 = vmul.f32 %v1031, %v1066
        %v1145 = vmul.f32 %v1000, %v1071
        %v1146 = vmul.f32 %v1032, %v1071
        %v1147 = vmul.f32 %v1001, %v1076
        %v1148 = vmul.f32 %v1033, %v1076
        %v1149 = vmul.f32 %v1002, %v1081
        %v1150 = vmul.f32 %v1034, %v1081
        %v1151 = vmul.f32 %v1003, %v1086
        %v1152 = vmul.f32 %v1035, %v1086
        %v1153 = vmul.f32 %v1004, %v1091
        %v1154 = vmul.f32 %v1036, %v1091
        %v1155 = vmul.f32 %v1005, %v1096
        %v1156 = vmul.f32 %v1037, %v1096
        %v1157 = vmul.f32 %v1006, %v1101
        %v1158 = vmul.f32 %v1038, %v1101
        %v1159 = vmul.f32 %v1007, %v1106
        %v1160 = vmul.f32 %v1039, %v1106
        %v1161 = vmul.f32 %v1008, %v1111
        %v1162 = vmul.f32 %v1040, %v1111
        %v1163 = vmul.f32 %v1009, %v1116
        %v1164 = vmul.f32 %v1041, %v1116
        %v1165 = vmul.f32 %v1010, %v1121
        %v1166 = vmul.f32 %v1042, %v1121
        %v1167 = vmul.f32 %v1011, %v1126
        %v1168 = vmul.f32 %v1043, %v1126
        %v1169 = vmul.f32 %v1012, %v1131
        %v1170 = vmul.f32 %v1044, %v1131
        %v1171 = vmul.f32 %v1013, %v1136
        %v1172 = vmul.f32 %v1045, %v1136
        %v1173 = vmul.f32 %v1014, %v1141
        %v1174 = vmul.f32 %v1046, %v1141
        %v1175 = vadd.f32 %v1143, %v1145
        %v1176 = vadd.f32 %v1175, %v1147
        %v1177 = vadd.f32 %v1176, %v1149
        %v1178 = vadd.f32 %v1177, %v1151
        %v1179 = vadd.f32 %v1178, %v1153
        %v1180 = vadd.f32 %v1179, %v1155
        %v1181 = vadd.f32 %v1180, %v1157
        %v1182 = vadd.f32 %v1181, %v1159
        %v1183 = vadd.f32 %v1182, %v1161
        %v1184 = vadd.f32 %v1183, %v1163
        %v1185 = vadd.f32 %v1184, %v1165
        %v1186 = vadd.f32 %v1185, %v1167
        %v1187 = vadd.f32 %v1186, %v1169
        %v1188 = vadd.f32 %v1187, %v1171
        %v1189 = vadd.f32 %v1188, %v1173
        %v1190 = vrot.slane %v1189, 4
        %v1191 = vadd.f32 %v1189, %v1190
        %v1192 = vrot.slane %v1191, 2
        %v1193 = vadd.f32 %v1191, %v1192
        %v1194 = vrot.slane %v1193, 1
        %v1195 = vadd.f32 %v1193, %v1194
        %v1196 = vadd.f32 %v1144, %v1146
        %v1197 = vadd.f32 %v1196, %v1148
        %v1198 = vadd.f32 %v1197, %v1150
        %v1199 = vadd.f32 %v1198, %v1152
        %v1200 = vadd.f32 %v1199, %v1154
        %v1201 = vadd.f32 %v1200, %v1156
        %v1202 = vadd.f32 %v1201, %v1158
        %v1203 = vadd.f32 %v1202, %v1160
        %v1204 = vadd.f32 %v1203, %v1162
        %v1205 = vadd.f32 %v1204, %v1164
        %v1206 = vadd.f32 %v1205, %v1166
        %v1207 = vadd.f32 %v1206, %v1168
        %v1208 = vadd.f32 %v1207, %v1170
        %v1209 = vadd.f32 %v1208, %v1172
        %v1210 = vadd.f32 %v1209, %v1174
        %v1211 = vrot.slane %v1210, 4
        %v1212 = vadd.f32 %v1210, %v1211
        %v1213 = vrot.slane %v1212, 2
        %v1214 = vadd.f32 %v1212, %v1213
        %v1215 = vrot.slane %v1214, 1
        %v1216 = vadd.f32 %v1214, %v1215
        %v1217 = vld [vmem:[#allocation2] sm:$0x1]
        %1219 = vset.pattern.permute.xlu0 0
        %1220 = vperm.xlu0 %1219, %v1217
        %v1221 = vpop.permute.xlu0 %1220
        %v1223 = vlaneseq
        %v1224 = vshrl.u32 %v1223, 7
        %v1225 = vsub.s32 0, %v1224
        %v1226 = vrot.slane %v1221, %v1225
        %v1227 = vadd.f32 %v1195, %v1226
        %v1228 = vadd.f32 %v1216, %v1226
        %v1231 = vcombine.low %v1227, %v1228
        %v1233 = vunpack.c.l.s4 1966171168
        %v1234 = vunpack.c.0.s8 %v1233
        %v1235 = vlaneseq
        %v1236 = vshrl.u32 %v1235, 7
        %v1237 = vsub.s32 %v1234, %v1236
        %v1238 = vrot.slane %v1231, %v1237
        %v1240 = vunpack.c.l.s4 1966171168
        %v1241 = vunpack.c.0.s8 %v1240
        %v1242 = vlaneseq
        %v1243 = vshrl.u32 %v1242, 7
        %v1244 = vsub.s32 %v1241, %v1243
        %v1245 = vrot.slane %v1238, %v1244
        %v1247 = vlaneseq
        %vm1248 = vcmp.ge.s32.totalorder %v1247, 0
        %vm1249 = vcmp.lt.s32.totalorder %v1247, 256
        %vm1250 = vmand %vm1248, %vm1249
        %1251 = vst.msk [vmem:[%s286] sm:$0x3] %vm1250, %v1245
        %s1252 = sand.u32 %s183, 1
        %s1253 = scalar_lea.sflag [#allocation4], %s1252
        %s1254 = sand.u32 %s183, 1
        %s1255 = smul.addr %s1254, 2
        %s1256 = scalar_lea.vmem [#allocation3], %s1255
        // Predicated region
        $region49: #{tpu_custom_call.1} parent=47 // pred_check
          %p1257 = pneg %p193
        $region50: #{tpu_custom_call.1} parent=47 // pred_check_branch
          %1259 = sbr.rel (%p1257) target = $region52
        $region51: #{tpu_custom_call.1} parent=47 // pred_region
          %s1260 = smul.u32 2, %s23
          %s1261 = ssub.s32 3, %s1260
          %p1262 = scmp.lt.s32.totalorder %s1261, 2
          %s1263 = scalar_select %p1262, %s1261, 2
          %s1264 = smul.u32 16, %s1263
          %s1266 = ssub.s32 32, %s1264
          %1267 = vsyncadd %s1253, %s1266
          %p1268 = scmp.ne.s32.totalorder 0, %s1264
          %s1269 = smul.addr %s1260, 16
          %s1270 = scalar_lea.hbm %s7, %s1269
          %s1271 = sshll.u32 %s1263, 4
          %s1272 = sshll.u32 %s1256, 4
          %s1273 = int_to_ptr.vmem [resolvable:$true] %s1272
          %1275 = dma.vmem_to_hbm [thread:$0]  (%p1268), %s1273, %s1271, %s1270, %s1253
        $region52: #{tpu_custom_call.1} parent=47 // pred_fallthru
          _
      $region48: #{tpu_custom_call.1} parent=5 // pred_fallthru
        _
      %p1276 = scmp.le.s32.totalorder 2, %s18
      // Predicated region
      $region53: #{tpu_custom_call.1} parent=5 // pred_check
        %p1277 = pneg %p1276
      $region54: #{tpu_custom_call.1} parent=5 // pred_check_branch
        %1279 = sbr.rel (%p1277) target = $region56
      $region55: #{tpu_custom_call.1} parent=5 // pred_region
        %s1280 = ssub.s32 %s18, 2
        // Predicated region
        $region57: #{tpu_custom_call.1} parent=55 // pred_check
          %p1281 = pneg %p199
        $region58: #{tpu_custom_call.1} parent=55 // pred_check_branch
          %1283 = sbr.rel (%p1281) target = $region60
        $region59: #{tpu_custom_call.1} parent=55 // pred_region
          %s1284 = sand.u32 %s184, 1
          %s1285 = scalar_lea.sflag [#allocation4], %s1284
          %s1286 = sand.u32 %s184, 1
          %s1287 = smul.addr %s1286, 2
          %s1288 = scalar_lea.vmem [#allocation3], %s1287
          %1289 = dma.done %s1285, 32
        $region60: #{tpu_custom_call.1} parent=55 // pred_fallthru
          _
      $region56: #{tpu_custom_call.1} parent=5 // pred_fallthru
        _
    $region6: #{tpu_custom_call.1} parent=1 // loop_footer
      %s22 = sadd.s32 1, %s18
    $region7: #{tpu_custom_call.1} parent=1 // loop_footer_branch
      %17 = sbr.rel target = $region3
    $region8: #{tpu_custom_call.1} parent=1 // loop_exit
      _
    %1290 = vsyncpa [#allocation4], 1
    %s1291 = scalar_lea.sflag [#allocation4], 1
    %1292 = vsyncpa %s1291, 1

</llo_original>
